<compile_context>
chip_gen: v5e
topology: v5e:2x2
jax: 0.10.0
libtpu: 0.0.40
codegen_flags: <defaults>
</compile_context>

<pallas_src>
import functools

import jax
import jax.numpy as jnp
from jax import lax
from jax.experimental import pallas as pl
from jax.experimental.pallas import tpu as pltpu


_FILL = 0.5
_VMEM_LIMIT_BYTES = 32 * 1024 * 1024


def _cdiv(a, b):
    return -(-a // b)


def _fill_bottom_kernel(x_ref, o_ref, *, threshold, col_base, fill):
    """Aliased path: the grid covers only the blanked lane region.

    Fill-only blocks write the constant; the (at most one) straddling block per
    batch block reads the input and does the masked select.
    """
    tl = o_ref.shape[-1]
    col0 = col_base + pl.program_id(1) * tl

    @pl.when(col0 >= threshold)          # fully blanked block: constant store only
    def _():
        o_ref[...] = jnp.full(o_ref.shape, fill, o_ref.dtype)

    @pl.when(col0 < threshold)           # straddle block: masked merge
    def _():
        cols = lax.broadcasted_iota(jnp.int32, (1, tl), 1) + col0
        x = x_ref[...].astype(o_ref.dtype)
        o_ref[...] = jnp.where(cols < threshold, x,
                               jnp.full(x.shape, fill, o_ref.dtype))


def _mask_copy_kernel(x_ref, o_ref, *, threshold, fill):
    """Full-grid path (dtype promotion): copy / fill / masked-select per block."""
    tl = o_ref.shape[-1]
    col0 = pl.program_id(1) * tl
    full_keep = col0 + tl <= threshold
    full_fill = col0 >= threshold

    @pl.when(full_keep)                  # fully kept: straight cast+copy
    def _():
        o_ref[...] = x_ref[...].astype(o_ref.dtype)

    @pl.when(full_fill)                  # fully blanked: constant store
    def _():
        o_ref[...] = jnp.full(o_ref.shape, fill, o_ref.dtype)

    @pl.when(jnp.logical_and(jnp.logical_not(full_keep),
                             jnp.logical_not(full_fill)))
    def _():                             # single straddling block
        cols = lax.broadcasted_iota(jnp.int32, (1, tl), 1) + col0
        x = x_ref[...].astype(o_ref.dtype)
        o_ref[...] = jnp.where(cols < threshold, x,
                               jnp.full(x.shape, fill, o_ref.dtype))


def _choose_blocks(B, L, in_dtype, out_dtype, target_block_bytes):
    """Pick (bb, tl) obeying the TPU tile constraints within ~target bytes/buffer."""
    in_size = jnp.dtype(in_dtype).itemsize
    out_size = jnp.dtype(out_dtype).itemsize
    itemsize = max(in_size, out_size)
    # Min sublane tile: 8 for 32-bit, 16 for 16-bit, 32 for 8-bit dtypes.
    sub_mult = max(8, 32 // in_size, 32 // out_size)
    max_elems = max(sub_mult * 128, target_block_bytes // itemsize)
    if sub_mult * L <= max_elems:
        tl = L                                              # full lane extent
        bb = (max_elems // L) // sub_mult * sub_mult
        bb = min(max(bb, sub_mult), B)                      # multiple of sub_mult or == B
    else:
        bb = min(B, sub_mult)
        tl = min(L, max(128, (max_elems // bb) // 128 * 128))
    return bb, tl, sub_mult


def _maybe_split_batch(B, bb, sub_mult, total_steps):
    """Ensure >=2 parallel grid steps when cheap, so both v7x TCs get work."""
    if total_steps == 1 and B >= 2 * sub_mult:
        return max(sub_mult, (B // 2) // sub_mult * sub_mult)
    return bb


def _pallas_slice_bottom(x, threshold, out_dtype, *, use_alias=True,
                         target_block_bytes=4 * 1024 * 1024):
    """x: (B, L) -> (B, L) in out_dtype; out[b, j] = x[b, j] if j < threshold else 0.5."""
    B, L = x.shape
    out_dtype = jnp.dtype(out_dtype)
    bb, tl, sub_mult = _choose_blocks(B, L, x.dtype, out_dtype, target_block_bytes)
    n_lane = _cdiv(L, tl)
    compiler_params = pltpu.CompilerParams(
        dimension_semantics=("parallel", "parallel"),
        vmem_limit_bytes=_VMEM_LIMIT_BYTES)

    aliased = use_alias and x.dtype == out_dtype
    if aliased:
        # Grid covers only lane blocks intersecting [threshold, L); kept blocks
        # are preserved through the alias and never touched.
        first_fill_block = threshold // tl
        lane_steps = n_lane - first_fill_block
        bb = _maybe_split_batch(B, bb, sub_mult, _cdiv(B, bb) * lane_steps)
        grid = (_cdiv(B, bb), lane_steps)
        kernel = functools.partial(_fill_bottom_kernel, threshold=threshold,
                                   col_base=first_fill_block * tl, fill=_FILL)
        return pl.pallas_call(
            kernel,
            out_shape=jax.ShapeDtypeStruct((B, L), out_dtype),
            grid=grid,
            # Input clamped to the straddle block: fetched once per batch block,
            # re-fetch skipped for subsequent fill-only steps.
            in_specs=[pl.BlockSpec((bb, tl), lambda b, j: (b, first_fill_block))],
            out_specs=pl.BlockSpec((bb, tl), lambda b, j: (b, j + first_fill_block)),
            input_output_aliases={0: 0},
            compiler_params=compiler_params,
        )(x)

    # Dtype-promotion path: full grid, but input index_map clamped so fill-only
    # blocks never re-fetch input from HBM.
    bb = _maybe_split_batch(B, bb, sub_mult, _cdiv(B, bb) * n_lane)
    grid = (_cdiv(B, bb), n_lane)
    last_needed_block = (threshold - 1) // tl if threshold > 0 else 0
    kernel = functools.partial(_mask_copy_kernel, threshold=threshold, fill=_FILL)
    return pl.pallas_call(
        kernel,
        out_shape=jax.ShapeDtypeStruct((B, L), out_dtype),
        grid=grid,
        in_specs=[pl.BlockSpec(
            (bb, tl), lambda b, j: (b, jnp.minimum(j, last_needed_block)))],
        out_specs=pl.BlockSpec((bb, tl), lambda b, j: (b, j)),
        compiler_params=compiler_params,
    )(x)


class SliceBottom:
    """JAX/Pallas port of the PyTorch SliceBottom module (blanks bottom rows to 0.5)."""

    def __init__(self, crop_percentage, device=None):
        if crop_percentage < 0:
            crop_percentage = 0
        if crop_percentage > 1:
            crop_percentage = 1
        self.crop_percentage = crop_percentage

    def __call__(self, img, *, use_alias=True):
        N, C, H, W = img.shape
        crop = int(H - H * self.crop_percentage)
        if crop >= H:                    # PyTorch path: len(range(crop, H)) == 0
            return img
        # torch promotes img * float32 mask -> float; mirror that promotion.
        out_dtype = jnp.result_type(img.dtype, jnp.float32)
        x2 = img.reshape(N * C, H * W)   # row-major: row h occupies cols [h*W, (h+1)*W)
        y2 = _pallas_slice_bottom(x2, crop * W, out_dtype, use_alias=use_alias)
        return y2.reshape(N, C, H, W)


if __name__ == "__main__":
    key = jax.random.PRNGKey(0)
    img = jax.random.uniform(key, (2, 4, 16, 16), dtype=jnp.float32)
    N, C, H, W = img.shape

    module = SliceBottom(crop_percentage=0.25)

    # Pure-jnp reference mirroring the PyTorch math (computed up front so the
    # aliased kernel call can freely consume its private copy of the input).
    crop = int(H - H * module.crop_percentage)
    row_keep = (jnp.arange(H) < crop)[None, None, :, None]
    ref = jax.block_until_ready(jnp.where(row_keep, img, 0.5).astype(jnp.float32))

    # Aliased fast path (float32 in/out): only the blanked region is written.
    out_alias = jax.block_until_ready(module(img * 1.0))
    # Full-grid promotion path (exercised for coverage).
    out_full = jax.block_until_ready(module(img, use_alias=False))

    for out in (out_alias, out_full):
        assert out.shape == (N, C, H, W), out.shape
        assert out.dtype == jnp.float32, out.dtype
        assert bool(jnp.all(jnp.isfinite(out)))
        assert bool(jnp.allclose(out, ref, atol=1e-6)), float(jnp.max(jnp.abs(out - ref)))

    # crop_percentage >= 1 blanks every row; crop_percentage <= 0 is identity.
    out_all = jax.block_until_ready(SliceBottom(1.0)(img * 1.0))
    assert bool(jnp.allclose(out_all, 0.5))
    out_none = SliceBottom(0.0)(img)
    assert out_none is img

    print("KERNEL_OK")
</pallas_src>

<mosaic_0001>
module attributes {stable_mosaic.version = 11 : i64} {
  func.func @_fill_bottom_kernel(%arg0: i32, %arg1: i32, %arg2: memref<8x256xf32, #tpu.memory_space<vmem>>, %arg3: memref<8x256xf32, #tpu.memory_space<vmem>>) attributes {dimension_semantics = [#tpu.dimension_semantics<parallel>, #tpu.dimension_semantics<parallel>], iteration_bounds = array<i64: 1, 1>, scalar_prefetch = 0 : i64, scratch_operands = 0 : i64, tpu.core_type = #tpu.core_type<tc>, window_params = [{transform_indices = @transform_0, window_bounds = array<i64: 8, 256>}, {transform_indices = @transform_1, window_bounds = array<i64: 8, 256>}]} {
    %c256_i32 = arith.constant 256 : i32
    %0 = arith.muli %arg1, %c256_i32 : i32
    %c0_i32 = arith.constant 0 : i32
    %1 = arith.addi %c0_i32, %0 : i32
    %c192_i32 = arith.constant 192 : i32
    %2 = arith.cmpi sge, %1, %c192_i32 : i32
    %3 = arith.extui %2 : i1 to i32
    %c0_i32_0 = arith.constant 0 : i32
    %4 = arith.cmpi ne, %3, %c0_i32_0 : i32
    scf.if %4 {
      %cst = arith.constant 5.000000e-01 : f32
      %8 = vector.broadcast %cst : f32 to vector<8x256xf32>
      %c0 = arith.constant 0 : index
      %c0_3 = arith.constant 0 : index
      %9 = vector.load %arg3[%c0, %c0_3] : memref<8x256xf32, #tpu.memory_space<vmem>>, vector<8x256xf32>
      tpu.vector_store %arg3[%c0, %c0_3], %8 {strides = array<i32>} : memref<8x256xf32, #tpu.memory_space<vmem>>, vector<8x256xf32>,
    } else {
    }
    %c192_i32_1 = arith.constant 192 : i32
    %5 = arith.cmpi slt, %1, %c192_i32_1 : i32
    %6 = arith.extui %5 : i1 to i32
    %c0_i32_2 = arith.constant 0 : i32
    %7 = arith.cmpi ne, %6, %c0_i32_2 : i32
    scf.if %7 {
      %8 = tpu.iota {dimensions = array<i32: 1>} : vector<1x256xi32>
      %9 = vector.broadcast %1 : i32 to vector<1x256xi32>
      %10 = arith.addi %8, %9 : vector<1x256xi32>
      %c0 = arith.constant 0 : index
      %c0_3 = arith.constant 0 : index
      %11 = vector.load %arg2[%c0, %c0_3] : memref<8x256xf32, #tpu.memory_space<vmem>>, vector<8x256xf32>
      %c192_i32_4 = arith.constant 192 : i32
      %12 = vector.broadcast %c192_i32_4 : i32 to vector<1x256xi32>
      %13 = arith.cmpi slt, %10, %12 : vector<1x256xi32>
      %cst = arith.constant 5.000000e-01 : f32
      %14 = vector.broadcast %cst : f32 to vector<8x256xf32>
      %15 = vector.shape_cast %13 : vector<1x256xi1> to vector<1x256xi1>
      %16 = vector.broadcast %15 : vector<1x256xi1> to vector<8x256xi1>
      %17 = arith.select %16, %11, %14 : vector<8x256xi1>, vector<8x256xf32>
      %c0_5 = arith.constant 0 : index
      %c0_6 = arith.constant 0 : index
      %18 = vector.load %arg3[%c0_5, %c0_6] : memref<8x256xf32, #tpu.memory_space<vmem>>, vector<8x256xf32>
      tpu.vector_store %arg3[%c0_5, %c0_6], %17 {strides = array<i32>} : memref<8x256xf32, #tpu.memory_space<vmem>>, vector<8x256xf32>,
    } else {
    }
    return
  }
  func.func @transform_0(%arg0: i32, %arg1: i32) -> (i32, i32) {
    %c0_i32 = arith.constant 0 : i32
    %c0_i32_0 = arith.constant 0 : i32
    return %arg0, %c0_i32 : i32, i32
  }
  func.func @transform_1(%arg0: i32, %arg1: i32) -> (i32, i32) {
    %c0_i32 = arith.constant 0 : i32
    %0 = arith.addi %arg1, %c0_i32 : i32
    %c0_i32_0 = arith.constant 0 : i32
    return %arg0, %0 : i32, i32
  }
}

</mosaic_0001>

<llo_original>
// kernel: tpu_custom_call.1
$region0: #{tpu_custom_call.1}
  #allocation0 [shape = 'u32[]', space=smem, size = 0x4, offset = 0x4, fixed_abs, tag = 'smem constant byte address 0x4 - core index']
  #allocation1 [shape = 'u32[72,128]{1,0:T(1,128)}', space=vmem, size = 0x9000, scoped, tag = 'internal scratch']
  %s0 = inlined_call_operand.hbm [shape: f32[8,256], index: 0, kind: input, shape index: {}, may-alias: {0,1}]
  %s1 = inlined_call_operand.hbm [shape: f32[8,256], index: 1, kind: output, shape index: {}, may-alias: {0,1}]
  %s2 = sld [smem:[#allocation0]]
  $region26: #{tpu_custom_call.1} parent=0
    _
  %s4 = ssub.s32 1, %s2
  %s5 = scalar_select 0, %s4, %s2
  $region1: #{tpu_custom_call.1} parent=0
    #allocation2 [shape = 'u8[8192]{0}', space=vmem, size = 0x2000, scoped, tag = 'input window, operand 0, single buffered']
    #allocation3 [shape = 's32[1]{0}', space=sflag, size = 0x4, scoped, tag = 'scoped memory for tpu_custom_call.1']
    #allocation4 [shape = 's32[1]{0}', space=sflag, size = 0x4, scoped, tag = 'scoped memory for tpu_custom_call.1']
    #allocation5 [shape = 'u8[8192]{0}', space=vmem, size = 0x2000, scoped, tag = 'output window, operand 0, single buffered']
    %6 = vsyncpa [#allocation3], 0
    %7 = vsyncpa [#allocation4], 0
    // Predicated region
    $region2: #{tpu_custom_call.1} parent=1 // pred_check
      _
    $region3: #{tpu_custom_call.1} parent=1 // pred_check_branch
      %9 = sbr.rel (0) target = $region5
    $region4: #{tpu_custom_call.1} parent=1 // pred_region
      %11 = vsyncadd [#allocation3], 0
      %s13 = sshll.u32 %s0, 4
      %s14 = int_to_ptr.hbm [resolvable:$true] %s13
      %s15 = sshll.u32 [#allocation2], 4
      %s16 = int_to_ptr.vmem [resolvable:$true] %s15
      %18 = dma.hbm_to_vmem [thread:$0]  %s14, 256, %s16, [#allocation3]
    $region5: #{tpu_custom_call.1} parent=1 // pred_fallthru
      _
    // Predicated region
    $region6: #{tpu_custom_call.1} parent=1 // pred_check
      _
    $region7: #{tpu_custom_call.1} parent=1 // pred_check_branch
      %20 = sbr.rel (0) target = $region9
    $region8: #{tpu_custom_call.1} parent=1 // pred_region
      %22 = dma.done [#allocation3], 256
    $region9: #{tpu_custom_call.1} parent=1 // pred_fallthru
      _
    %s23 = smul.u32 0, 256
    %p24 = scmp.ge.s32.totalorder %s23, 192
    // Predicated region
    $region10: #{tpu_custom_call.1} parent=1 // pred_check
      %p25 = pneg %p24
    $region11: #{tpu_custom_call.1} parent=1 // pred_check_branch
      %27 = sbr.rel (%p25) target = $region13
    $region12: #{tpu_custom_call.1} parent=1 // pred_region
      %28 = vst [vmem:[#allocation5] sm:$0xff] 0.5
      %29 = vst [vmem:[#allocation5 + $0x8] sm:$0xff] 0.5
    $region13: #{tpu_custom_call.1} parent=1 // pred_fallthru
      _
    %p30 = scmp.lt.s32.totalorder %s23, 192
    // Predicated region
    $region14: #{tpu_custom_call.1} parent=1 // pred_check
      %p31 = pneg %p30
    $region15: #{tpu_custom_call.1} parent=1 // pred_check_branch
      %33 = sbr.rel (%p31) target = $region17
    $region16: #{tpu_custom_call.1} parent=1 // pred_region
      %v34 = vlaneseq
      %v35 = vand.u32 %v34, 127
      %v36 = vadd.s32 %v35, 128
      %v37 = vstv %s23
      %v38 = vadd.s32 %v35, %v37
      %v39 = vadd.s32 %v36, %v37
      %v40 = vld [vmem:[#allocation2] sm:$0xff]
      %v41 = vld [vmem:[#allocation2 + $0x8] sm:$0xff]
      %vm42 = vcmp.lt.s32.totalorder %v38, 192
      %vm43 = vcmp.lt.s32.totalorder %v39, 192
      %v44 = vsel %vm42, 1, 0
      %v45 = vsel %vm43, 1, 0
      %vm46 = vcmp.eq.s32.totalorder %v44, 1
      %vm47 = vcmp.eq.s32.totalorder %v45, 1
      %v48 = vsel %vm46, %v40, 0.5
      %v49 = vsel %vm47, %v41, 0.5
      %50 = vst [vmem:[#allocation5] sm:$0xff] %v48
      %51 = vst [vmem:[#allocation5 + $0x8] sm:$0xff] %v49
    $region17: #{tpu_custom_call.1} parent=1 // pred_fallthru
      _
    // Predicated region
    $region18: #{tpu_custom_call.1} parent=1 // pred_check
      _
    $region19: #{tpu_custom_call.1} parent=1 // pred_check_branch
      %53 = sbr.rel (0) target = $region21
    $region20: #{tpu_custom_call.1} parent=1 // pred_region
      %55 = vsyncadd [#allocation4], 0
      %s57 = sshll.u32 [#allocation5], 4
      %s58 = int_to_ptr.vmem [resolvable:$true] %s57
      %s59 = sshll.u32 %s1, 4
      %s60 = int_to_ptr.hbm [resolvable:$true] %s59
      %62 = dma.vmem_to_hbm [thread:$0]  %s58, 256, %s60, [#allocation4]
    $region21: #{tpu_custom_call.1} parent=1 // pred_fallthru
      _
    // Predicated region
    $region22: #{tpu_custom_call.1} parent=1 // pred_check
      _
    $region23: #{tpu_custom_call.1} parent=1 // pred_check_branch
      %64 = sbr.rel (0) target = $region25
    $region24: #{tpu_custom_call.1} parent=1 // pred_region
      %66 = dma.done [#allocation4], 256
    $region25: #{tpu_custom_call.1} parent=1 // pred_fallthru
      _
    %67 = vsyncpa [#allocation3], 1
    %68 = vsyncpa [#allocation4], 1

</llo_original>
